<compile_context>
chip_gen: v6e
topology: v6e:2x2x1
jax: 0.10.0
libtpu: 0.0.40
codegen_flags: <defaults>
</compile_context>

<pallas_src>
import jax
import jax.numpy as jnp
from jax import lax
from jax.experimental import pallas as pl
from jax.experimental.pallas import tpu as pltpu  # noqa: F401  (imported per task requirements)

# ----------------------------- module configuration ------------------------------
IN_PLANES   = 16
OUT_PLANES  = 16
KERNEL_SIZE = 3
EXP_SIZE    = 32
STRIDE      = 1
USE_SE      = True
USE_HS      = True
BN_EPS      = 1e-5

N_BATCH = 2
SEQ_LEN = 16


def _make_divisible(ch, divisor=8, min_ch=None):
    if min_ch is None:
        min_ch = divisor
    new_ch = max(min_ch, int(ch + divisor / 2) // divisor * divisor)
    if new_ch < 0.9 * ch:
        new_ch += divisor
    return new_ch


SQUEEZE_C = _make_divisible(EXP_SIZE // 4, 8)

# Static configuration guards: fail loudly instead of silently compiling a wrong kernel.
assert STRIDE == 1, "TODO(synk): stride=2 strided-depthwise path is not implemented in-kernel"
assert KERNEL_SIZE == 3, "TODO(synk): kernel only builds shift matrices for K=3"
assert EXP_SIZE != IN_PLANES, "expand conv is compiled into the kernel; exp==in variant not implemented"
assert SEQ_LEN >= KERNEL_SIZE

# ------------------------- packed-weight-slab layout (static) ----------------------
def _ceil8(n):
    return -(-n // 8) * 8


R_IN  = N_BATCH * IN_PLANES     # 32  rows of the batch-stacked input
R_EXP = N_BATCH * EXP_SIZE      # 64  rows of the batch-stacked expanded activation
R_OUT = N_BATCH * OUT_PLANES    # 32  rows of the batch-stacked output

OFF_W1  = 0                               # (R_EXP, R_IN)  block-diagonal expand weight
OFF_W3  = OFF_W1 + _ceil8(R_EXP)          # (R_OUT, R_EXP) block-diagonal project weight
OFF_SA  = OFF_W3 + _ceil8(R_OUT)          # (L, L)  y @ SA == y[:, l-1]  (zero-padded)
OFF_SB  = OFF_SA + _ceil8(SEQ_LEN)        # (L, L)  y @ SB == y[:, l+1]  (zero-padded)
OFF_MA  = OFF_SB + _ceil8(SEQ_LEN)        # (R_EXP, MA_COLS): [wfc1t | b1 | b2 | dw-1 | dw0 | dw+1]
MA_COLS = SQUEEZE_C + 2 + KERNEL_SIZE
OFF_MB  = OFF_MA + _ceil8(R_EXP)          # (MB_ROWS, MB_COLS): [wfc2 | bfc2 | b3] + bfc1 row
MB_ROWS = _ceil8(EXP_SIZE + 1)
MB_COLS = SQUEEZE_C + 2
SLAB_R  = OFF_MB + MB_ROWS                # 232
SLAB_C  = max(R_IN, R_EXP, SEQ_LEN, MA_COLS, MB_COLS)   # 64

# hardswish / hardsigmoid /6 factors and the SE 1/L are folded into the slab on the host.
ACT_SCALE  = 6.0 if USE_HS else 1.0
PROJ_SCALE = ACT_SCALE * (6.0 if USE_SE else 1.0)


def _hardswish(x):
    return x * jnp.clip(x + 3.0, 0.0, 6.0) / 6.0


def _hardsigmoid(x):
    return jnp.clip(x + 3.0, 0.0, 6.0) / 6.0


def _act(x):                      # reference-side activation
    return _hardswish(x) if USE_HS else jnp.maximum(x, 0.0)


def _act_unscaled(z):             # kernel-side: ACT_SCALE * activation (the /6 lives in the weights)
    if USE_HS:
        return z * jnp.clip(z + 3.0, 0.0, 6.0)
    return jnp.maximum(z, 0.0)


# ---------------------------------- Pallas kernel ---------------------------------
def inverted_residual_kernel(x_ref, slab_ref, out_ref):
    """Whole InvertedResidual forward; both batches fused on the sublane (row) axis."""
    x = x_ref[...]                                                  # (N*Cin, L)

    # ---- unpack the single packed weight slab (static, tile-aligned reads) ----
    w1_bd = slab_ref[OFF_W1:OFF_W1 + R_EXP, :R_IN]                  # block-diag expand weight
    w3_bd = slab_ref[OFF_W3:OFF_W3 + R_OUT, :R_EXP]                 # block-diag project weight (/6/6 folded)
    sh_m  = slab_ref[OFF_SA:OFF_SA + SEQ_LEN, :SEQ_LEN]             # y @ sh_m == y[:, l-1]
    sh_p  = slab_ref[OFF_SB:OFF_SB + SEQ_LEN, :SEQ_LEN]             # y @ sh_p == y[:, l+1]
    ma    = slab_ref[OFF_MA:OFF_MA + R_EXP, :MA_COLS]
    mb    = slab_ref[OFF_MB:OFF_MB + MB_ROWS, :MB_COLS]

    wfc1t = ma[:, 0:SQUEEZE_C]                                      # (R_EXP, Csq), 1/(6*L) folded
    b1    = ma[:, SQUEEZE_C + 0:SQUEEZE_C + 1]                      # (R_EXP, 1)
    b2    = ma[:, SQUEEZE_C + 1:SQUEEZE_C + 2]
    dw_m  = ma[:, SQUEEZE_C + 2:SQUEEZE_C + 3]                      # depthwise tap for y[:, l-1]  (/6 folded)
    dw_c  = ma[:, SQUEEZE_C + 3:SQUEEZE_C + 4]                      # center tap                   (/6 folded)
    dw_p  = ma[:, SQUEEZE_C + 4:SQUEEZE_C + 5]                      # tap for y[:, l+1]            (/6 folded)
    wfc2  = mb[:EXP_SIZE, 0:SQUEEZE_C]                              # (Cexp, Csq)
    bfc2  = mb[:EXP_SIZE, SQUEEZE_C:SQUEEZE_C + 1]                  # (Cexp, 1)
    b3    = mb[:R_OUT, SQUEEZE_C + 1:SQUEEZE_C + 2]                 # (R_OUT, 1)
    bfc1  = mb[EXP_SIZE:EXP_SIZE + 1, 0:SQUEEZE_C]                  # (1, Csq)

    # expand 1x1 conv (BN folded), both batches in ONE MXU dot
    y1 = _act_unscaled(jnp.dot(w1_bd, x, preferred_element_type=jnp.float32) + b1)   # (R_EXP, L)

    # depthwise K=3 conv (BN + hardswish/6 folded into the tap columns): lane shifts come
    # from host-built (L, L) shift matrices on the otherwise-idle MXU; zero padding is
    # baked into their empty boundary columns, so no index/iota/roll setup is needed.
    z2 = (b2 + dw_c * y1
          + dw_m * jnp.dot(y1, sh_m, preferred_element_type=jnp.float32)
          + dw_p * jnp.dot(y1, sh_p, preferred_element_type=jnp.float32))
    y2 = _act_unscaled(z2)                                          # (R_EXP, L) == 6 * true y2

    if USE_SE:
        # Per-(batch, channel) sums live on rows -> ONE lane reduce covers both batches.
        sq  = jnp.sum(y2, axis=1, keepdims=True)                    # (R_EXP, 1)
        tmp = wfc1t * sq                                            # mean /L and act /6 already folded
        sig = []
        for n in range(N_BATCH):                                    # tiny per-batch tails (VPU/XLU only)
            t = jnp.sum(tmp[n * EXP_SIZE:(n + 1) * EXP_SIZE], axis=0, keepdims=True) + bfc1
            t = jnp.maximum(t, 0.0)                                 # (1, Csq)
            u = jnp.sum(wfc2 * t, axis=1, keepdims=True) + bfc2     # (Cexp, 1)
            sig.append(jnp.clip(u + 3.0, 0.0, 6.0))                 # 6 * hardsigmoid (the /6 is in w3_bd)
        y2 = y2 * (jnp.concatenate(sig, axis=0) if N_BATCH > 1 else sig[0])

    # project 1x1 conv (BN + the two /6 factors folded), both batches in ONE MXU dot
    y3 = jnp.dot(w3_bd, y2, preferred_element_type=jnp.float32) + b3                 # (R_OUT, L)

    if STRIDE == 1 and IN_PLANES == OUT_PLANES:
        y3 = y3 + x                                                 # residual connection

    out_ref[...] = y3.astype(out_ref.dtype)                         # single full-block store


@jax.jit
def inverted_residual_pallas(x_ncl, slab):
    """x_ncl: (N, C_in, L) float32 in the PyTorch NCL layout.  Returns (N, C_out, L)."""
    assert x_ncl.shape == (N_BATCH, IN_PLANES, SEQ_LEN)
    # Grid-less call: the whole (tiny) problem runs in one invocation and exactly two input
    # DMAs (x + packed slab).  The NCL <-> row-slab conversions are pure reshapes (bitcasts).
    y_rows = pl.pallas_call(
        inverted_residual_kernel,
        out_shape=jax.ShapeDtypeStruct((N_BATCH * OUT_PLANES, SEQ_LEN), x_ncl.dtype),
    )(x_ncl.reshape(N_BATCH * IN_PLANES, SEQ_LEN), slab)
    return y_rows.reshape(N_BATCH, OUT_PLANES, SEQ_LEN)


# ------------------------- parameter construction / BN folding --------------------
def make_params(key):
    ks = jax.random.split(key, 10)
    r = lambda k, shape, s=0.2: jax.random.normal(k, shape, jnp.float32) * s

    def bn_params(k, c):
        k1, k2, k3, k4 = jax.random.split(k, 4)
        gamma = 1.0 + 0.1 * jax.random.normal(k1, (c,), jnp.float32)
        beta = 0.1 * jax.random.normal(k2, (c,), jnp.float32)
        mean = 0.1 * jax.random.normal(k3, (c,), jnp.float32)
        var = jax.random.uniform(k4, (c,), jnp.float32, 0.5, 1.5)
        return gamma, beta, mean, var

    raw = {
        "conv1_w": r(ks[0], (EXP_SIZE, IN_PLANES, 1)),
        "bn1": bn_params(ks[1], EXP_SIZE),
        "dw_w": r(ks[2], (EXP_SIZE, 1, KERNEL_SIZE)),
        "bn2": bn_params(ks[3], EXP_SIZE),
        "fc1_w": r(ks[4], (SQUEEZE_C, EXP_SIZE, 1)),
        "fc1_b": r(ks[5], (SQUEEZE_C,)),
        "fc2_w": r(ks[6], (EXP_SIZE, SQUEEZE_C, 1)),
        "fc2_b": r(ks[7], (EXP_SIZE,)),
        "conv3_w": r(ks[8], (OUT_PLANES, EXP_SIZE, 1)),
        "bn3": bn_params(ks[9], OUT_PLANES),
    }

    def fold(w, bn):
        gamma, beta, mean, var = bn
        scale = gamma / jnp.sqrt(var + BN_EPS)
        return w * scale[:, None, None], beta - mean * scale

    w1f, b1f = fold(raw["conv1_w"], raw["bn1"])       # (Cexp, Cin, 1), (Cexp,)
    wdwf, b2f = fold(raw["dw_w"], raw["bn2"])         # (Cexp, 1, K),  (Cexp,)
    w3f, b3f = fold(raw["conv3_w"], raw["bn3"])       # (Cout, Cexp, 1), (Cout,)

    def blockdiag(w):
        rr, cc = w.shape
        out = jnp.zeros((N_BATCH * rr, N_BATCH * cc), jnp.float32)
        for i in range(N_BATCH):
            out = out.at[i * rr:(i + 1) * rr, i * cc:(i + 1) * cc].set(w)
        return out

    tile_rows = lambda v: jnp.tile(v, (N_BATCH,) + (1,) * (v.ndim - 1))

    w1_bd = blockdiag(w1f[:, :, 0])                                  # (R_EXP, R_IN)
    w3_bd = blockdiag(w3f[:, :, 0] / PROJ_SCALE)                     # (R_OUT, R_EXP), /6 (act) /6 (hsig) folded
    shift_m = jnp.eye(SEQ_LEN, k=1, dtype=jnp.float32)               # y @ shift_m -> y[:, l-1], zero pad at l=0
    shift_p = jnp.eye(SEQ_LEN, k=-1, dtype=jnp.float32)              # y @ shift_p -> y[:, l+1], zero pad at l=L-1
    taps = wdwf[:, 0, :] / ACT_SCALE                                 # (Cexp, K), hardswish /6 folded
    wfc1t = jnp.transpose(raw["fc1_w"][:, :, 0]) / (ACT_SCALE * SEQ_LEN)   # (Cexp, Csq), /6 and 1/L folded

    # ---- single packed f32 slab: 2 input DMAs total (x + slab) ----
    slab = jnp.zeros((SLAB_R, SLAB_C), jnp.float32)
    slab = slab.at[OFF_W1:OFF_W1 + R_EXP, :R_IN].set(w1_bd)
    slab = slab.at[OFF_W3:OFF_W3 + R_OUT, :R_EXP].set(w3_bd)
    slab = slab.at[OFF_SA:OFF_SA + SEQ_LEN, :SEQ_LEN].set(shift_m)
    slab = slab.at[OFF_SB:OFF_SB + SEQ_LEN, :SEQ_LEN].set(shift_p)
    slab = slab.at[OFF_MA:OFF_MA + R_EXP, 0:SQUEEZE_C].set(tile_rows(wfc1t))
    slab = slab.at[OFF_MA:OFF_MA + R_EXP, SQUEEZE_C + 0].set(tile_rows(b1f))
    slab = slab.at[OFF_MA:OFF_MA + R_EXP, SQUEEZE_C + 1].set(tile_rows(b2f))
    for k in range(KERNEL_SIZE):
        slab = slab.at[OFF_MA:OFF_MA + R_EXP, SQUEEZE_C + 2 + k].set(tile_rows(taps[:, k]))
    slab = slab.at[OFF_MB:OFF_MB + EXP_SIZE, 0:SQUEEZE_C].set(raw["fc2_w"][:, :, 0])
    slab = slab.at[OFF_MB:OFF_MB + EXP_SIZE, SQUEEZE_C].set(raw["fc2_b"])
    slab = slab.at[OFF_MB:OFF_MB + R_OUT, SQUEEZE_C + 1].set(tile_rows(b3f))
    slab = slab.at[OFF_MB + EXP_SIZE, 0:SQUEEZE_C].set(raw["fc1_b"])

    return raw, slab


# ------------------------------ pure-JAX reference ---------------------------------
def ref_forward(x, raw):
    def conv1x1(t, w):
        return lax.conv_general_dilated(t, w, (1,), "VALID",
                                        dimension_numbers=("NCH", "OIH", "NCH"))

    def bn(t, p):
        g, b, m, v = p
        return (t - m[None, :, None]) / jnp.sqrt(v[None, :, None] + BN_EPS) \
            * g[None, :, None] + b[None, :, None]

    y = _act(bn(conv1x1(x, raw["conv1_w"]), raw["bn1"]))
    pad = (KERNEL_SIZE - 1) // 2
    y = lax.conv_general_dilated(y, raw["dw_w"], (STRIDE,), [(pad, pad)],
                                 dimension_numbers=("NCH", "OIH", "NCH"),
                                 feature_group_count=EXP_SIZE)
    y = _act(bn(y, raw["bn2"]))
    if USE_SE:
        s = jnp.mean(y, axis=-1, keepdims=True)
        s = conv1x1(s, raw["fc1_w"]) + raw["fc1_b"][None, :, None]
        s = jnp.maximum(s, 0.0)
        s = conv1x1(s, raw["fc2_w"]) + raw["fc2_b"][None, :, None]
        s = _hardsigmoid(s)
        y = y * s
    y = bn(conv1x1(y, raw["conv3_w"]), raw["bn3"])
    if STRIDE == 1 and IN_PLANES == OUT_PLANES:
        y = y + x
    return y


# --------------------------------------- main --------------------------------------
if __name__ == "__main__":
    key = jax.random.PRNGKey(0)
    kx, kparam = jax.random.split(key)
    x = jax.random.normal(kx, (N_BATCH, IN_PLANES, SEQ_LEN), jnp.float32)

    raw_params, weight_slab = make_params(kparam)

    out = jax.block_until_ready(inverted_residual_pallas(x, weight_slab))
    ref = jax.block_until_ready(ref_forward(x, raw_params))

    assert out.shape == (N_BATCH, OUT_PLANES, SEQ_LEN)
    err = jnp.max(jnp.abs(out - ref))
    assert jnp.allclose(out, ref, rtol=1e-4, atol=1e-4), f"max abs err {err}"

    print("KERNEL_OK")
</pallas_src>

<mosaic_0001>
module attributes {stable_mosaic.version = 11 : i64} {
  func.func @inverted_residual_kernel(%arg0: memref<32x16xf32, #tpu.memory_space<vmem>>, %arg1: memref<232x64xf32, #tpu.memory_space<vmem>>, %arg2: memref<32x16xf32, #tpu.memory_space<vmem>>) attributes {dimension_semantics = [], scalar_prefetch = 0 : i64, scratch_operands = 0 : i64, tpu.core_type = #tpu.core_type<tc>} {
    %c0 = arith.constant 0 : index
    %c0_0 = arith.constant 0 : index
    %0 = vector.load %arg0[%c0, %c0_0] : memref<32x16xf32, #tpu.memory_space<vmem>>, vector<32x16xf32>
    %c0_1 = arith.constant 0 : index
    %c0_2 = arith.constant 0 : index
    %1 = vector.load %arg1[%c0_1, %c0_2] : memref<232x64xf32, #tpu.memory_space<vmem>>, vector<64x32xf32>
    %c64 = arith.constant 64 : index
    %c0_3 = arith.constant 0 : index
    %2 = vector.load %arg1[%c64, %c0_3] : memref<232x64xf32, #tpu.memory_space<vmem>>, vector<32x64xf32>
    %c96 = arith.constant 96 : index
    %c0_4 = arith.constant 0 : index
    %3 = vector.load %arg1[%c96, %c0_4] : memref<232x64xf32, #tpu.memory_space<vmem>>, vector<16x16xf32>
    %c112 = arith.constant 112 : index
    %c0_5 = arith.constant 0 : index
    %4 = vector.load %arg1[%c112, %c0_5] : memref<232x64xf32, #tpu.memory_space<vmem>>, vector<16x16xf32>
    %c128 = arith.constant 128 : index
    %c0_6 = arith.constant 0 : index
    %5 = vector.load %arg1[%c128, %c0_6] : memref<232x64xf32, #tpu.memory_space<vmem>>, vector<64x13xf32>
    %c192 = arith.constant 192 : index
    %c0_7 = arith.constant 0 : index
    %6 = vector.load %arg1[%c192, %c0_7] : memref<232x64xf32, #tpu.memory_space<vmem>>, vector<40x10xf32>
    %7 = vector.extract_strided_slice %5 {offsets = [0, 0], sizes = [64, 8], strides = [1, 1]} : vector<64x13xf32> to vector<64x8xf32>
    %8 = vector.extract_strided_slice %5 {offsets = [0, 8], sizes = [64, 1], strides = [1, 1]} : vector<64x13xf32> to vector<64x1xf32>
    %9 = vector.extract_strided_slice %5 {offsets = [0, 9], sizes = [64, 1], strides = [1, 1]} : vector<64x13xf32> to vector<64x1xf32>
    %10 = vector.extract_strided_slice %5 {offsets = [0, 10], sizes = [64, 1], strides = [1, 1]} : vector<64x13xf32> to vector<64x1xf32>
    %11 = vector.extract_strided_slice %5 {offsets = [0, 11], sizes = [64, 1], strides = [1, 1]} : vector<64x13xf32> to vector<64x1xf32>
    %12 = vector.extract_strided_slice %5 {offsets = [0, 12], sizes = [64, 1], strides = [1, 1]} : vector<64x13xf32> to vector<64x1xf32>
    %13 = vector.extract_strided_slice %6 {offsets = [0, 0], sizes = [32, 8], strides = [1, 1]} : vector<40x10xf32> to vector<32x8xf32>
    %14 = vector.extract_strided_slice %6 {offsets = [0, 8], sizes = [32, 1], strides = [1, 1]} : vector<40x10xf32> to vector<32x1xf32>
    %15 = vector.extract_strided_slice %6 {offsets = [0, 9], sizes = [32, 1], strides = [1, 1]} : vector<40x10xf32> to vector<32x1xf32>
    %16 = vector.extract_strided_slice %6 {offsets = [32, 0], sizes = [1, 8], strides = [1, 1]} : vector<40x10xf32> to vector<1x8xf32>
    %cst = arith.constant dense<0.000000e+00> : vector<64x16xf32>
    %17 = tpu.matmul %1, %0, %cst {dimension_numbers = #tpu.dot_dimension_numbers<[1], [0], [0], [1], [0, 0, 1, 1], [], []>} : vector<64x32xf32>, vector<32x16xf32>, vector<64x16xf32> -> vector<64x16xf32>
    %18 = vector.broadcast %8 : vector<64x1xf32> to vector<64x16xf32>
    %19 = arith.addf %17, %18 : vector<64x16xf32>
    %cst_8 = arith.constant 3.000000e+00 : f32
    %20 = vector.broadcast %cst_8 : f32 to vector<64x16xf32>
    %21 = arith.addf %19, %20 : vector<64x16xf32>
    %cst_9 = arith.constant 0.000000e+00 : f32
    %cst_10 = arith.constant 6.000000e+00 : f32
    %22 = vector.broadcast %cst_9 : f32 to vector<64x16xf32>
    %23 = arith.maximumf %22, %21 : vector<64x16xf32>
    %24 = vector.broadcast %cst_10 : f32 to vector<64x16xf32>
    %25 = arith.minimumf %24, %23 : vector<64x16xf32>
    %26 = arith.mulf %19, %25 : vector<64x16xf32>
    %27 = vector.broadcast %11 : vector<64x1xf32> to vector<64x16xf32>
    %28 = arith.mulf %27, %26 : vector<64x16xf32>
    %29 = vector.broadcast %9 : vector<64x1xf32> to vector<64x16xf32>
    %30 = arith.addf %29, %28 : vector<64x16xf32>
    %cst_11 = arith.constant dense<0.000000e+00> : vector<64x16xf32>
    %31 = tpu.matmul %26, %3, %cst_11 {dimension_numbers = #tpu.dot_dimension_numbers<[1], [0], [0], [1], [0, 0, 1, 1], [], []>} : vector<64x16xf32>, vector<16x16xf32>, vector<64x16xf32> -> vector<64x16xf32>
    %32 = vector.broadcast %10 : vector<64x1xf32> to vector<64x16xf32>
    %33 = arith.mulf %32, %31 : vector<64x16xf32>
    %34 = arith.addf %30, %33 : vector<64x16xf32>
    %cst_12 = arith.constant dense<0.000000e+00> : vector<64x16xf32>
    %35 = tpu.matmul %26, %4, %cst_12 {dimension_numbers = #tpu.dot_dimension_numbers<[1], [0], [0], [1], [0, 0, 1, 1], [], []>} : vector<64x16xf32>, vector<16x16xf32>, vector<64x16xf32> -> vector<64x16xf32>
    %36 = vector.broadcast %12 : vector<64x1xf32> to vector<64x16xf32>
    %37 = arith.mulf %36, %35 : vector<64x16xf32>
    %38 = arith.addf %34, %37 : vector<64x16xf32>
    %cst_13 = arith.constant 3.000000e+00 : f32
    %39 = vector.broadcast %cst_13 : f32 to vector<64x16xf32>
    %40 = arith.addf %38, %39 : vector<64x16xf32>
    %cst_14 = arith.constant 0.000000e+00 : f32
    %cst_15 = arith.constant 6.000000e+00 : f32
    %41 = vector.broadcast %cst_14 : f32 to vector<64x16xf32>
    %42 = arith.maximumf %41, %40 : vector<64x16xf32>
    %43 = vector.broadcast %cst_15 : f32 to vector<64x16xf32>
    %44 = arith.minimumf %43, %42 : vector<64x16xf32>
    %45 = arith.mulf %38, %44 : vector<64x16xf32>
    %cst_16 = arith.constant dense<0.000000e+00> : vector<64xf32>
    %46 = vector.multi_reduction <add>, %45, %cst_16 [1] : vector<64x16xf32> to vector<64xf32>
    %47 = vector.shape_cast %46 : vector<64xf32> to vector<64x1xf32>
    %48 = vector.broadcast %47 : vector<64x1xf32> to vector<64x8xf32>
    %49 = arith.mulf %7, %48 : vector<64x8xf32>
    %50 = vector.extract_strided_slice %49 {offsets = [0, 0], sizes = [32, 8], strides = [1, 1]} : vector<64x8xf32> to vector<32x8xf32>
    %cst_17 = arith.constant dense<0.000000e+00> : vector<8xf32>
    %51 = vector.multi_reduction <add>, %50, %cst_17 [0] : vector<32x8xf32> to vector<8xf32>
    %52 = vector.shape_cast %51 : vector<8xf32> to vector<1x8xf32>
    %53 = arith.addf %52, %16 : vector<1x8xf32>
    %cst_18 = arith.constant 0.000000e+00 : f32
    %54 = vector.broadcast %cst_18 : f32 to vector<1x8xf32>
    %55 = arith.maximumf %53, %54 : vector<1x8xf32>
    %56 = vector.broadcast %55 : vector<1x8xf32> to vector<32x8xf32>
    %57 = arith.mulf %13, %56 : vector<32x8xf32>
    %cst_19 = arith.constant dense<0.000000e+00> : vector<32xf32>
    %58 = vector.multi_reduction <add>, %57, %cst_19 [1] : vector<32x8xf32> to vector<32xf32>
    %59 = vector.shape_cast %58 : vector<32xf32> to vector<32x1xf32>
    %60 = arith.addf %59, %14 : vector<32x1xf32>
    %cst_20 = arith.constant 3.000000e+00 : f32
    %61 = vector.broadcast %cst_20 : f32 to vector<32x1xf32>
    %62 = arith.addf %60, %61 : vector<32x1xf32>
    %cst_21 = arith.constant 0.000000e+00 : f32
    %cst_22 = arith.constant 6.000000e+00 : f32
    %63 = vector.broadcast %cst_21 : f32 to vector<32x1xf32>
    %64 = arith.maximumf %63, %62 : vector<32x1xf32>
    %65 = vector.broadcast %cst_22 : f32 to vector<32x1xf32>
    %66 = arith.minimumf %65, %64 : vector<32x1xf32>
    %67 = vector.extract_strided_slice %49 {offsets = [32, 0], sizes = [32, 8], strides = [1, 1]} : vector<64x8xf32> to vector<32x8xf32>
    %cst_23 = arith.constant dense<0.000000e+00> : vector<8xf32>
    %68 = vector.multi_reduction <add>, %67, %cst_23 [0] : vector<32x8xf32> to vector<8xf32>
    %69 = vector.shape_cast %68 : vector<8xf32> to vector<1x8xf32>
    %70 = arith.addf %69, %16 : vector<1x8xf32>
    %cst_24 = arith.constant 0.000000e+00 : f32
    %71 = vector.broadcast %cst_24 : f32 to vector<1x8xf32>
    %72 = arith.maximumf %70, %71 : vector<1x8xf32>
    %73 = vector.broadcast %72 : vector<1x8xf32> to vector<32x8xf32>
    %74 = arith.mulf %13, %73 : vector<32x8xf32>
    %cst_25 = arith.constant dense<0.000000e+00> : vector<32xf32>
    %75 = vector.multi_reduction <add>, %74, %cst_25 [1] : vector<32x8xf32> to vector<32xf32>
    %76 = vector.shape_cast %75 : vector<32xf32> to vector<32x1xf32>
    %77 = arith.addf %76, %14 : vector<32x1xf32>
    %cst_26 = arith.constant 3.000000e+00 : f32
    %78 = vector.broadcast %cst_26 : f32 to vector<32x1xf32>
    %79 = arith.addf %77, %78 : vector<32x1xf32>
    %cst_27 = arith.constant 0.000000e+00 : f32
    %cst_28 = arith.constant 6.000000e+00 : f32
    %80 = vector.broadcast %cst_27 : f32 to vector<32x1xf32>
    %81 = arith.maximumf %80, %79 : vector<32x1xf32>
    %82 = vector.broadcast %cst_28 : f32 to vector<32x1xf32>
    %83 = arith.minimumf %82, %81 : vector<32x1xf32>
    %84 = tpu.concatenate %66, %83 in 0 : vector<32x1xf32>, vector<32x1xf32> -> vector<64x1xf32>
    %85 = vector.broadcast %84 : vector<64x1xf32> to vector<64x16xf32>
    %86 = arith.mulf %45, %85 : vector<64x16xf32>
    %cst_29 = arith.constant dense<0.000000e+00> : vector<32x16xf32>
    %87 = tpu.matmul %2, %86, %cst_29 {dimension_numbers = #tpu.dot_dimension_numbers<[1], [0], [0], [1], [0, 0, 1, 1], [], []>} : vector<32x64xf32>, vector<64x16xf32>, vector<32x16xf32> -> vector<32x16xf32>
    %88 = vector.broadcast %15 : vector<32x1xf32> to vector<32x16xf32>
    %89 = arith.addf %87, %88 : vector<32x16xf32>
    %90 = arith.addf %89, %0 : vector<32x16xf32>
    %c0_30 = arith.constant 0 : index
    %c0_31 = arith.constant 0 : index
    %91 = vector.load %arg2[%c0_30, %c0_31] : memref<32x16xf32, #tpu.memory_space<vmem>>, vector<32x16xf32>
    tpu.vector_store %arg2[%c0_30, %c0_31], %90 {strides = array<i32>} : memref<32x16xf32, #tpu.memory_space<vmem>>, vector<32x16xf32>,
    return
  }
}

</mosaic_0001>

<llo_original>
// kernel: inverted_residual_pallas.1
$region0: #{inverted_residual_pallas.1}
  #allocation0 [shape = 'u32[]', space=smem, size = 0x4, offset = 0x4, fixed_abs, tag = 'smem constant byte address 0x4 - core index']
  #allocation1 [shape = 'u32[144,128]{1,0:T(1,128)}', space=vmem, size = 0x12000, scoped, tag = 'internal scratch']
  %s0 = inlined_call_operand.vmem [shape: f32[32,16], index: 0, kind: input, shape index: {}]
  %s1 = inlined_call_operand.vmem [shape: f32[232,64], index: 1, kind: input, shape index: {}]
  %s2 = inlined_call_operand.hbm [shape: f32[32,16], index: 2, kind: output, shape index: {}]
  %s3 = sld [smem:[#allocation0]]
  $region18: #{inverted_residual_pallas.1} parent=0
    _
  %s5 = ssub.s32 1, %s3
  %s6 = scalar_select 0, %s5, %s3
  $region1: #{inverted_residual_pallas.1} parent=0
    #allocation2 [shape = 'u8[16384]{0}', space=vmem, size = 0x4000, scoped, tag = 'output window, operand 0, single buffered']
    #allocation3 [shape = 's32[1]{0}', space=sflag, size = 0x4, scoped, tag = 'scoped memory for inverted_residual_pallas.1']
    %7 = vsyncpa [#allocation3], 0
    // Predicated region
    $region2: #{inverted_residual_pallas.1} parent=1 // pred_check
      _
    $region3: #{inverted_residual_pallas.1} parent=1 // pred_check_branch
      %9 = sbr.rel (0) target = $region5
    $region4: #{inverted_residual_pallas.1} parent=1 // pred_region
      _
    $region5: #{inverted_residual_pallas.1} parent=1 // pred_fallthru
      _
    // Predicated region
    $region6: #{inverted_residual_pallas.1} parent=1 // pred_check
      _
    $region7: #{inverted_residual_pallas.1} parent=1 // pred_check_branch
      %11 = sbr.rel (0) target = $region9
    $region8: #{inverted_residual_pallas.1} parent=1 // pred_region
      _
    $region9: #{inverted_residual_pallas.1} parent=1 // pred_fallthru
      _
    %v12 = vld [vmem:[%s0] sm:$0xff]
    %v13 = vld [vmem:[%s0 + $0x8] sm:$0xff]
    %v14 = vld [vmem:[%s0 + $0x10] sm:$0xff]
    %v15 = vld [vmem:[%s0 + $0x18] sm:$0xff]
    %v16 = vld [vmem:[%s1] sm:$0xff]
    %v17 = vld [vmem:[%s1 + $0x8] sm:$0xff]
    %v18 = vld [vmem:[%s1 + $0x10] sm:$0xff]
    %v19 = vld [vmem:[%s1 + $0x18] sm:$0xff]
    %v20 = vld [vmem:[%s1 + $0x20] sm:$0xff]
    %v21 = vld [vmem:[%s1 + $0x28] sm:$0xff]
    %v22 = vld [vmem:[%s1 + $0x30] sm:$0xff]
    %v23 = vld [vmem:[%s1 + $0x38] sm:$0xff]
    %v24 = vld [vmem:[%s1 + $0x40] sm:$0xff]
    %v25 = vld [vmem:[%s1 + $0x48] sm:$0xff]
    %v26 = vld [vmem:[%s1 + $0x50] sm:$0xff]
    %v27 = vld [vmem:[%s1 + $0x58] sm:$0xff]
    %v28 = vld [vmem:[%s1 + $0x60] sm:$0xff]
    %v29 = vld [vmem:[%s1 + $0x68] sm:$0xff]
    %v30 = vld [vmem:[%s1 + $0x70] sm:$0xff]
    %v31 = vld [vmem:[%s1 + $0x78] sm:$0xff]
    %v32 = vld [vmem:[%s1 + $0x80] sm:$0xff]
    %v33 = vld [vmem:[%s1 + $0x88] sm:$0xff]
    %v34 = vld [vmem:[%s1 + $0x90] sm:$0xff]
    %v35 = vld [vmem:[%s1 + $0x98] sm:$0xff]
    %v36 = vld [vmem:[%s1 + $0xa0] sm:$0xff]
    %v37 = vld [vmem:[%s1 + $0xa8] sm:$0xff]
    %v38 = vld [vmem:[%s1 + $0xb0] sm:$0xff]
    %v39 = vld [vmem:[%s1 + $0xb8] sm:$0xff]
    %v40 = vld [vmem:[%s1 + $0xc0] sm:$0xff]
    %v41 = vld [vmem:[%s1 + $0xc8] sm:$0xff]
    %v42 = vld [vmem:[%s1 + $0xd0] sm:$0xff]
    %v43 = vld [vmem:[%s1 + $0xd8] sm:$0xff]
    %v44 = vld [vmem:[%s1 + $0xe0] sm:$0xff]
    %46 = vset.pattern.permute.xlu0 8
    %47 = vperm.xlu0 %46, %v32
    %v48 = vpop.permute.xlu0 %47
    %51 = vset.pattern.permute.xlu0 8
    %52 = vperm.xlu0 %51, %v33
    %v53 = vpop.permute.xlu0 %52
    %56 = vset.pattern.permute.xlu0 8
    %57 = vperm.xlu0 %56, %v34
    %v58 = vpop.permute.xlu0 %57
    %61 = vset.pattern.permute.xlu0 8
    %62 = vperm.xlu0 %61, %v35
    %v63 = vpop.permute.xlu0 %62
    %66 = vset.pattern.permute.xlu0 8
    %67 = vperm.xlu0 %66, %v36
    %v68 = vpop.permute.xlu0 %67
    %71 = vset.pattern.permute.xlu0 8
    %72 = vperm.xlu0 %71, %v37
    %v73 = vpop.permute.xlu0 %72
    %76 = vset.pattern.permute.xlu0 8
    %77 = vperm.xlu0 %76, %v38
    %v78 = vpop.permute.xlu0 %77
    %81 = vset.pattern.permute.xlu0 8
    %82 = vperm.xlu0 %81, %v39
    %v83 = vpop.permute.xlu0 %82
    %vm85 = vcmask 261120
    %v87 = vsel %vm85, %v16, 0
    %v90 = vsel %vm85, %v17, 0
    %v93 = vsel %vm85, %v18, 0
    %v96 = vsel %vm85, %v19, 0
    %v99 = vsel %vm85, %v20, 0
    %v102 = vsel %vm85, %v21, 0
    %v105 = vsel %vm85, %v22, 0
    %v108 = vsel %vm85, %v23, 0
    %110 = vmatprep.subr.mxu0 0.0
    %111 = vmatpush1.msra.mxu0 0.0
    %112 = vmatprep.subr.mxu0 0.0
    %113 = vmatpush1.msra.mxu0 0.0
    %114 = vmatprep.subr.mxu0 0.0
    %115 = vmatpush1.msra.mxu0 0.0
    %116 = vmatprep.subr.mxu0 0.0
    %117 = vmatpush1.msra.mxu0 0.0
    %118 = vmatprep.subr.mxu0 0.0
    %119 = vmatpush1.msra.mxu0 0.0
    %120 = vmatprep.subr.mxu0 0.0
    %121 = vmatpush1.msra.mxu0 0.0
    %122 = vmatprep.subr.mxu0 0.0
    %123 = vmatpush1.msra.mxu0 0.0
    %124 = vmatprep.subr.mxu0 0.0
    %125 = vmatpush1.msra.mxu0 0.0
    %126 = vmatprep.subr.mxu0 0.0
    %127 = vmatpush1.msra.mxu0 0.0
    %128 = vmatprep.subr.mxu0 0.0
    %129 = vmatpush1.msra.mxu0 0.0
    %130 = vmatprep.subr.mxu0 0.0
    %131 = vmatpush1.msra.mxu0 0.0
    %132 = vmatprep.subr.mxu0 0.0
    %133 = vmatpush1.msra.mxu0 0.0
    %134 = vmatprep.subr.mxu0 0.0
    %135 = vmatpush1.msra.mxu0 %v15
    %136 = vmatprep.subr.mxu0 0.0
    %137 = vmatpush1.msra.mxu0 %v14
    %138 = vmatprep.subr.mxu0 0.0
    %139 = vmatpush1.msra.mxu0 %v13
    %140 = vmatprep.subr.mxu0 0.0
    %141 = vmatpush1.msra.mxu0 %v12
    %142 = vmatprep.subr.mxu0 0.0
    %143 = vmatpush2.msra.mxu0 0.0
    %144 = vmatprep.subr.mxu0 0.0
    %145 = vmatpush2.msra.mxu0 0.0
    %146 = vmatprep.subr.mxu0 0.0
    %147 = vmatpush2.msra.mxu0 0.0
    %148 = vmatprep.subr.mxu0 0.0
    %149 = vmatpush2.msra.mxu0 0.0
    %150 = vmatprep.subr.mxu0 0.0
    %151 = vmatpush2.msra.mxu0 0.0
    %152 = vmatprep.subr.mxu0 0.0
    %153 = vmatpush2.msra.mxu0 0.0
    %154 = vmatprep.subr.mxu0 0.0
    %155 = vmatpush2.msra.mxu0 0.0
    %156 = vmatprep.subr.mxu0 0.0
    %157 = vmatpush2.msra.mxu0 0.0
    %158 = vmatprep.subr.mxu0 0.0
    %159 = vmatpush2.msra.mxu0 0.0
    %160 = vmatprep.subr.mxu0 0.0
    %161 = vmatpush2.msra.mxu0 0.0
    %162 = vmatprep.subr.mxu0 0.0
    %163 = vmatpush2.msra.mxu0 0.0
    %164 = vmatprep.subr.mxu0 0.0
    %165 = vmatpush2.msra.mxu0 0.0
    %166 = vmatprep.subr.mxu0 0.0
    %167 = vmatpush2.msra.mxu0 0.0
    %168 = vmatprep.subr.mxu0 0.0
    %169 = vmatpush2.msra.mxu0 0.0
    %170 = vmatprep.subr.mxu0 0.0
    %171 = vmatpush2.msra.mxu0 0.0
    %172 = vmatprep.subr.mxu0 0.0
    %173 = vmatpush2.msra.mxu0 0.0
    %174 = vmatprep.mubr.f32.mxu0 0.0
    %175 = vmatmul.mubr.f32.gmra.mxu0 %v87
    %v176 = vpop.f32.mrf.mxu0
    %v177 = vadd.f32 %v48, %v176
    %v178 = vpop.f32.mrf.mxu0
    %179 = vmatprep.mubr.f32.mxu0 0.0
    %180 = vmatmul.mubr.f32.gmra.mxu0 %v90
    %v181 = vpop.f32.mrf.mxu0
    %v182 = vadd.f32 %v53, %v181
    %v183 = vpop.f32.mrf.mxu0
    %184 = vmatprep.mubr.f32.mxu0 0.0
    %185 = vmatmul.mubr.f32.gmra.mxu0 %v93
    %v186 = vpop.f32.mrf.mxu0
    %v187 = vadd.f32 %v58, %v186
    %v188 = vpop.f32.mrf.mxu0
    %189 = vmatprep.mubr.f32.mxu0 0.0
    %190 = vmatmul.mubr.f32.gmra.mxu0 %v96
    %v191 = vpop.f32.mrf.mxu0
    %v192 = vadd.f32 %v63, %v191
    %v193 = vpop.f32.mrf.mxu0
    %194 = vmatprep.mubr.f32.mxu0 0.0
    %195 = vmatmul.mubr.f32.gmra.mxu0 %v99
    %v196 = vpop.f32.mrf.mxu0
    %v197 = vadd.f32 %v68, %v196
    %v198 = vpop.f32.mrf.mxu0
    %199 = vmatprep.mubr.f32.mxu0 0.0
    %200 = vmatmul.mubr.f32.gmra.mxu0 %v102
    %v201 = vpop.f32.mrf.mxu0
    %v202 = vadd.f32 %v73, %v201
    %v203 = vpop.f32.mrf.mxu0
    %204 = vmatprep.mubr.f32.mxu0 0.0
    %205 = vmatmul.mubr.f32.gmra.mxu0 %v105
    %v206 = vpop.f32.mrf.mxu0
    %v207 = vadd.f32 %v78, %v206
    %v208 = vpop.f32.mrf.mxu0
    %209 = vmatprep.mubr.f32.mxu0 0.0
    %210 = vmatmul.mubr.f32.gmra.mxu0 %v108
    %v211 = vpop.f32.mrf.mxu0
    %v212 = vadd.f32 %v83, %v211
    %v213 = vpop.f32.mrf.mxu0
    %214 = vdwg.mxu0
    %v215 = vadd.f32 %v177, 3.0
    %v216 = vadd.f32 %v182, 3.0
    %v217 = vadd.f32 %v187, 3.0
    %v218 = vadd.f32 %v192, 3.0
    %v219 = vadd.f32 %v197, 3.0
    %v220 = vadd.f32 %v202, 3.0
    %v221 = vadd.f32 %v207, 3.0
    %v222 = vadd.f32 %v212, 3.0
    %v223 = vmax.f32 %v215, 0.0
    %v224 = vmax.f32 %v216, 0.0
    %v225 = vmax.f32 %v217, 0.0
    %v226 = vmax.f32 %v218, 0.0
    %v227 = vmax.f32 %v219, 0.0
    %v228 = vmax.f32 %v220, 0.0
    %v229 = vmax.f32 %v221, 0.0
    %v230 = vmax.f32 %v222, 0.0
    %v231 = vmin.f32 %v223, 6.0
    %v232 = vmin.f32 %v224, 6.0
    %v233 = vmin.f32 %v225, 6.0
    %v234 = vmin.f32 %v226, 6.0
    %v235 = vmin.f32 %v227, 6.0
    %v236 = vmin.f32 %v228, 6.0
    %v237 = vmin.f32 %v229, 6.0
    %v238 = vmin.f32 %v230, 6.0
    %v239 = vmul.f32 %v177, %v231
    %v240 = vmul.f32 %v182, %v232
    %v241 = vmul.f32 %v187, %v233
    %v242 = vmul.f32 %v192, %v234
    %v243 = vmul.f32 %v197, %v235
    %v244 = vmul.f32 %v202, %v236
    %v245 = vmul.f32 %v207, %v237
    %v246 = vmul.f32 %v212, %v238
    %247 = vset.pattern.permute.xlu0 11
    %248 = vperm.xlu0 %247, %v32
    %v249 = vpop.permute.xlu0 %248
    %251 = vset.pattern.permute.xlu0 11
    %252 = vperm.xlu0 %251, %v33
    %v253 = vpop.permute.xlu0 %252
    %255 = vset.pattern.permute.xlu0 11
    %256 = vperm.xlu0 %255, %v34
    %v257 = vpop.permute.xlu0 %256
    %259 = vset.pattern.permute.xlu0 11
    %260 = vperm.xlu0 %259, %v35
    %v261 = vpop.permute.xlu0 %260
    %263 = vset.pattern.permute.xlu0 11
    %264 = vperm.xlu0 %263, %v36
    %v265 = vpop.permute.xlu0 %264
    %267 = vset.pattern.permute.xlu0 11
    %268 = vperm.xlu0 %267, %v37
    %v269 = vpop.permute.xlu0 %268
    %271 = vset.pattern.permute.xlu0 11
    %272 = vperm.xlu0 %271, %v38
    %v273 = vpop.permute.xlu0 %272
    %275 = vset.pattern.permute.xlu0 11
    %276 = vperm.xlu0 %275, %v39
    %v277 = vpop.permute.xlu0 %276
    %v279 = vmul.f32 %v249, %v239
    %v280 = vmul.f32 %v253, %v240
    %v281 = vmul.f32 %v257, %v241
    %v282 = vmul.f32 %v261, %v242
    %v283 = vmul.f32 %v265, %v243
    %v284 = vmul.f32 %v269, %v244
    %v285 = vmul.f32 %v273, %v245
    %v286 = vmul.f32 %v277, %v246
    %287 = vset.pattern.permute.xlu0 9
    %288 = vperm.xlu0 %287, %v32
    %v289 = vpop.permute.xlu0 %288
    %291 = vset.pattern.permute.xlu0 9
    %292 = vperm.xlu0 %291, %v33
    %v293 = vpop.permute.xlu0 %292
    %295 = vset.pattern.permute.xlu0 9
    %296 = vperm.xlu0 %295, %v34
    %v297 = vpop.permute.xlu0 %296
    %299 = vset.pattern.permute.xlu0 9
    %300 = vperm.xlu0 %299, %v35
    %v301 = vpop.permute.xlu0 %300
    %303 = vset.pattern.permute.xlu0 9
    %304 = vperm.xlu0 %303, %v36
    %v305 = vpop.permute.xlu0 %304
    %307 = vset.pattern.permute.xlu0 9
    %308 = vperm.xlu0 %307, %v37
    %v309 = vpop.permute.xlu0 %308
    %311 = vset.pattern.permute.xlu0 9
    %312 = vperm.xlu0 %311, %v38
    %v313 = vpop.permute.xlu0 %312
    %315 = vset.pattern.permute.xlu0 9
    %316 = vperm.xlu0 %315, %v39
    %v317 = vpop.permute.xlu0 %316
    %v319 = vadd.f32 %v289, %v279
    %v320 = vadd.f32 %v293, %v280
    %v321 = vadd.f32 %v297, %v281
    %v322 = vadd.f32 %v301, %v282
    %v323 = vadd.f32 %v305, %v283
    %v324 = vadd.f32 %v309, %v284
    %v325 = vadd.f32 %v313, %v285
    %v326 = vadd.f32 %v317, %v286
    %vm327 = vcmask 130048
    %v329 = vsel %vm327, %v239, 0
    %v332 = vsel %vm327, %v240, 0
    %v335 = vsel %vm327, %v241, 0
    %v338 = vsel %vm327, %v242, 0
    %v341 = vsel %vm327, %v243, 0
    %v344 = vsel %vm327, %v244, 0
    %v347 = vsel %vm327, %v245, 0
    %v350 = vsel %vm327, %v246, 0
    %352 = vmatprep.subr.mxu0 0.0
    %353 = vmatpush1.msra.mxu0 0.0
    %354 = vmatprep.subr.mxu0 0.0
    %355 = vmatpush1.msra.mxu0 0.0
    %356 = vmatprep.subr.mxu0 0.0
    %357 = vmatpush1.msra.mxu0 0.0
    %358 = vmatprep.subr.mxu0 0.0
    %359 = vmatpush1.msra.mxu0 0.0
    %360 = vmatprep.subr.mxu0 0.0
    %361 = vmatpush1.msra.mxu0 0.0
    %362 = vmatprep.subr.mxu0 0.0
    %363 = vmatpush1.msra.mxu0 0.0
    %364 = vmatprep.subr.mxu0 0.0
    %365 = vmatpush1.msra.mxu0 0.0
    %366 = vmatprep.subr.mxu0 0.0
    %367 = vmatpush1.msra.mxu0 0.0
    %368 = vmatprep.subr.mxu0 0.0
    %369 = vmatpush1.msra.mxu0 0.0
    %370 = vmatprep.subr.mxu0 0.0
    %371 = vmatpush1.msra.mxu0 0.0
    %372 = vmatprep.subr.mxu0 0.0
    %373 = vmatpush1.msra.mxu0 0.0
    %374 = vmatprep.subr.mxu0 0.0
    %375 = vmatpush1.msra.mxu0 0.0
    %376 = vmatprep.subr.mxu0 0.0
    %377 = vmatpush1.msra.mxu0 0.0
    %378 = vmatprep.subr.mxu0 0.0
    %379 = vmatpush1.msra.mxu0 0.0
    %380 = vmatprep.subr.mxu0 0.0
    %381 = vmatpush1.msra.mxu0 %v29
    %382 = vmatprep.subr.mxu0 0.0
    %383 = vmatpush1.msra.mxu0 %v28
    %384 = vmatprep.subr.mxu0 0.0
    %385 = vmatpush2.msra.mxu0 0.0
    %386 = vmatprep.subr.mxu0 0.0
    %387 = vmatpush2.msra.mxu0 0.0
    %388 = vmatprep.subr.mxu0 0.0
    %389 = vmatpush2.msra.mxu0 0.0
    %390 = vmatprep.subr.mxu0 0.0
    %391 = vmatpush2.msra.mxu0 0.0
    %392 = vmatprep.subr.mxu0 0.0
    %393 = vmatpush2.msra.mxu0 0.0
    %394 = vmatprep.subr.mxu0 0.0
    %395 = vmatpush2.msra.mxu0 0.0
    %396 = vmatprep.subr.mxu0 0.0
    %397 = vmatpush2.msra.mxu0 0.0
    %398 = vmatprep.subr.mxu0 0.0
    %399 = vmatpush2.msra.mxu0 0.0
    %400 = vmatprep.subr.mxu0 0.0
    %401 = vmatpush2.msra.mxu0 0.0
    %402 = vmatprep.subr.mxu0 0.0
    %403 = vmatpush2.msra.mxu0 0.0
    %404 = vmatprep.subr.mxu0 0.0
    %405 = vmatpush2.msra.mxu0 0.0
    %406 = vmatprep.subr.mxu0 0.0
    %407 = vmatpush2.msra.mxu0 0.0
    %408 = vmatprep.subr.mxu0 0.0
    %409 = vmatpush2.msra.mxu0 0.0
    %410 = vmatprep.subr.mxu0 0.0
    %411 = vmatpush2.msra.mxu0 0.0
    %412 = vmatprep.subr.mxu0 0.0
    %413 = vmatpush2.msra.mxu0 0.0
    %414 = vmatprep.subr.mxu0 0.0
    %415 = vmatpush2.msra.mxu0 0.0
    %416 = vmatprep.mubr.f32.mxu0 0.0
    %417 = vmatmul.mubr.f32.gmra.mxu0 %v329
    %v418 = vpop.f32.mrf.mxu0
    %v419 = vadd.f32 0.0, %v418
    %v420 = vpop.f32.mrf.mxu0
    %421 = vmatprep.mubr.f32.mxu0 0.0
    %422 = vmatmul.mubr.f32.gmra.mxu0 %v332
    %v423 = vpop.f32.mrf.mxu0
    %v424 = vadd.f32 0.0, %v423
    %v425 = vpop.f32.mrf.mxu0
    %426 = vmatprep.mubr.f32.mxu0 0.0
    %427 = vmatmul.mubr.f32.gmra.mxu0 %v335
    %v428 = vpop.f32.mrf.mxu0
    %v429 = vadd.f32 0.0, %v428
    %v430 = vpop.f32.mrf.mxu0
    %431 = vmatprep.mubr.f32.mxu0 0.0
    %432 = vmatmul.mubr.f32.gmra.mxu0 %v338
    %v433 = vpop.f32.mrf.mxu0
    %v434 = vadd.f32 0.0, %v433
    %v435 = vpop.f32.mrf.mxu0
    %436 = vmatprep.mubr.f32.mxu0 0.0
    %437 = vmatmul.mubr.f32.gmra.mxu0 %v341
    %v438 = vpop.f32.mrf.mxu0
    %v439 = vadd.f32 0.0, %v438
    %v440 = vpop.f32.mrf.mxu0
    %441 = vmatprep.mubr.f32.mxu0 0.0
    %442 = vmatmul.mubr.f32.gmra.mxu0 %v344
    %v443 = vpop.f32.mrf.mxu0
    %v444 = vadd.f32 0.0, %v443
    %v445 = vpop.f32.mrf.mxu0
    %446 = vmatprep.mubr.f32.mxu0 0.0
    %447 = vmatmul.mubr.f32.gmra.mxu0 %v347
    %v448 = vpop.f32.mrf.mxu0
    %v449 = vadd.f32 0.0, %v448
    %v450 = vpop.f32.mrf.mxu0
    %451 = vmatprep.mubr.f32.mxu0 0.0
    %452 = vmatmul.mubr.f32.gmra.mxu0 %v350
    %v453 = vpop.f32.mrf.mxu0
    %v454 = vadd.f32 0.0, %v453
    %v455 = vpop.f32.mrf.mxu0
    %456 = vdwg.mxu0
    %457 = vset.pattern.permute.xlu0 10
    %458 = vperm.xlu0 %457, %v32
    %v459 = vpop.permute.xlu0 %458
    %461 = vset.pattern.permute.xlu0 10
    %462 = vperm.xlu0 %461, %v33
    %v463 = vpop.permute.xlu0 %462
    %465 = vset.pattern.permute.xlu0 10
    %466 = vperm.xlu0 %465, %v34
    %v467 = vpop.permute.xlu0 %466
    %469 = vset.pattern.permute.xlu0 10
    %470 = vperm.xlu0 %469, %v35
    %v471 = vpop.permute.xlu0 %470
    %473 = vset.pattern.permute.xlu0 10
    %474 = vperm.xlu0 %473, %v36
    %v475 = vpop.permute.xlu0 %474
    %477 = vset.pattern.permute.xlu0 10
    %478 = vperm.xlu0 %477, %v37
    %v479 = vpop.permute.xlu0 %478
    %481 = vset.pattern.permute.xlu0 10
    %482 = vperm.xlu0 %481, %v38
    %v483 = vpop.permute.xlu0 %482
    %485 = vset.pattern.permute.xlu0 10
    %486 = vperm.xlu0 %485, %v39
    %v487 = vpop.permute.xlu0 %486
    %v489 = vmul.f32 %v459, %v419
    %v490 = vmul.f32 %v463, %v424
    %v491 = vmul.f32 %v467, %v429
    %v492 = vmul.f32 %v471, %v434
    %v493 = vmul.f32 %v475, %v439
    %v494 = vmul.f32 %v479, %v444
    %v495 = vmul.f32 %v483, %v449
    %v496 = vmul.f32 %v487, %v454
    %v497 = vadd.f32 %v319, %v489
    %v498 = vadd.f32 %v320, %v490
    %v499 = vadd.f32 %v321, %v491
    %v500 = vadd.f32 %v322, %v492
    %v501 = vadd.f32 %v323, %v493
    %v502 = vadd.f32 %v324, %v494
    %v503 = vadd.f32 %v325, %v495
    %v504 = vadd.f32 %v326, %v496
    %505 = vmatprep.subr.mxu0 0.0
    %506 = vmatpush1.msra.mxu0 0.0
    %507 = vmatprep.subr.mxu0 0.0
    %508 = vmatpush1.msra.mxu0 0.0
    %509 = vmatprep.subr.mxu0 0.0
    %510 = vmatpush1.msra.mxu0 0.0
    %511 = vmatprep.subr.mxu0 0.0
    %512 = vmatpush1.msra.mxu0 0.0
    %513 = vmatprep.subr.mxu0 0.0
    %514 = vmatpush1.msra.mxu0 0.0
    %515 = vmatprep.subr.mxu0 0.0
    %516 = vmatpush1.msra.mxu0 0.0
    %517 = vmatprep.subr.mxu0 0.0
    %518 = vmatpush1.msra.mxu0 0.0
    %519 = vmatprep.subr.mxu0 0.0
    %520 = vmatpush1.msra.mxu0 0.0
    %521 = vmatprep.subr.mxu0 0.0
    %522 = vmatpush1.msra.mxu0 0.0
    %523 = vmatprep.subr.mxu0 0.0
    %524 = vmatpush1.msra.mxu0 0.0
    %525 = vmatprep.subr.mxu0 0.0
    %526 = vmatpush1.msra.mxu0 0.0
    %527 = vmatprep.subr.mxu0 0.0
    %528 = vmatpush1.msra.mxu0 0.0
    %529 = vmatprep.subr.mxu0 0.0
    %530 = vmatpush1.msra.mxu0 0.0
    %531 = vmatprep.subr.mxu0 0.0
    %532 = vmatpush1.msra.mxu0 0.0
    %533 = vmatprep.subr.mxu0 0.0
    %534 = vmatpush1.msra.mxu0 %v31
    %535 = vmatprep.subr.mxu0 0.0
    %536 = vmatpush1.msra.mxu0 %v30
    %537 = vmatprep.subr.mxu0 0.0
    %538 = vmatpush2.msra.mxu0 0.0
    %539 = vmatprep.subr.mxu0 0.0
    %540 = vmatpush2.msra.mxu0 0.0
    %541 = vmatprep.subr.mxu0 0.0
    %542 = vmatpush2.msra.mxu0 0.0
    %543 = vmatprep.subr.mxu0 0.0
    %544 = vmatpush2.msra.mxu0 0.0
    %545 = vmatprep.subr.mxu0 0.0
    %546 = vmatpush2.msra.mxu0 0.0
    %547 = vmatprep.subr.mxu0 0.0
    %548 = vmatpush2.msra.mxu0 0.0
    %549 = vmatprep.subr.mxu0 0.0
    %550 = vmatpush2.msra.mxu0 0.0
    %551 = vmatprep.subr.mxu0 0.0
    %552 = vmatpush2.msra.mxu0 0.0
    %553 = vmatprep.subr.mxu0 0.0
    %554 = vmatpush2.msra.mxu0 0.0
    %555 = vmatprep.subr.mxu0 0.0
    %556 = vmatpush2.msra.mxu0 0.0
    %557 = vmatprep.subr.mxu0 0.0
    %558 = vmatpush2.msra.mxu0 0.0
    %559 = vmatprep.subr.mxu0 0.0
    %560 = vmatpush2.msra.mxu0 0.0
    %561 = vmatprep.subr.mxu0 0.0
    %562 = vmatpush2.msra.mxu0 0.0
    %563 = vmatprep.subr.mxu0 0.0
    %564 = vmatpush2.msra.mxu0 0.0
    %565 = vmatprep.subr.mxu0 0.0
    %566 = vmatpush2.msra.mxu0 0.0
    %567 = vmatprep.subr.mxu0 0.0
    %568 = vmatpush2.msra.mxu0 0.0
    %569 = vmatprep.mubr.f32.mxu0 0.0
    %570 = vmatmul.mubr.f32.gmra.mxu0 %v329
    %v571 = vpop.f32.mrf.mxu0
    %v572 = vadd.f32 0.0, %v571
    %v573 = vpop.f32.mrf.mxu0
    %574 = vmatprep.mubr.f32.mxu0 0.0
    %575 = vmatmul.mubr.f32.gmra.mxu0 %v332
    %v576 = vpop.f32.mrf.mxu0
    %v577 = vadd.f32 0.0, %v576
    %v578 = vpop.f32.mrf.mxu0
    %579 = vmatprep.mubr.f32.mxu0 0.0
    %580 = vmatmul.mubr.f32.gmra.mxu0 %v335
    %v581 = vpop.f32.mrf.mxu0
    %v582 = vadd.f32 0.0, %v581
    %v583 = vpop.f32.mrf.mxu0
    %584 = vmatprep.mubr.f32.mxu0 0.0
    %585 = vmatmul.mubr.f32.gmra.mxu0 %v338
    %v586 = vpop.f32.mrf.mxu0
    %v587 = vadd.f32 0.0, %v586
    %v588 = vpop.f32.mrf.mxu0
    %589 = vmatprep.mubr.f32.mxu0 0.0
    %590 = vmatmul.mubr.f32.gmra.mxu0 %v341
    %v591 = vpop.f32.mrf.mxu0
    %v592 = vadd.f32 0.0, %v591
    %v593 = vpop.f32.mrf.mxu0
    %594 = vmatprep.mubr.f32.mxu0 0.0
    %595 = vmatmul.mubr.f32.gmra.mxu0 %v344
    %v596 = vpop.f32.mrf.mxu0
    %v597 = vadd.f32 0.0, %v596
    %v598 = vpop.f32.mrf.mxu0
    %599 = vmatprep.mubr.f32.mxu0 0.0
    %600 = vmatmul.mubr.f32.gmra.mxu0 %v347
    %v601 = vpop.f32.mrf.mxu0
    %v602 = vadd.f32 0.0, %v601
    %v603 = vpop.f32.mrf.mxu0
    %604 = vmatprep.mubr.f32.mxu0 0.0
    %605 = vmatmul.mubr.f32.gmra.mxu0 %v350
    %v606 = vpop.f32.mrf.mxu0
    %v607 = vadd.f32 0.0, %v606
    %v608 = vpop.f32.mrf.mxu0
    %609 = vdwg.mxu0
    %610 = vset.pattern.permute.xlu0 12
    %611 = vperm.xlu0 %610, %v32
    %v612 = vpop.permute.xlu0 %611
    %614 = vset.pattern.permute.xlu0 12
    %615 = vperm.xlu0 %614, %v33
    %v616 = vpop.permute.xlu0 %615
    %618 = vset.pattern.permute.xlu0 12
    %619 = vperm.xlu0 %618, %v34
    %v620 = vpop.permute.xlu0 %619
    %622 = vset.pattern.permute.xlu0 12
    %623 = vperm.xlu0 %622, %v35
    %v624 = vpop.permute.xlu0 %623
    %626 = vset.pattern.permute.xlu0 12
    %627 = vperm.xlu0 %626, %v36
    %v628 = vpop.permute.xlu0 %627
    %630 = vset.pattern.permute.xlu0 12
    %631 = vperm.xlu0 %630, %v37
    %v632 = vpop.permute.xlu0 %631
    %634 = vset.pattern.permute.xlu0 12
    %635 = vperm.xlu0 %634, %v38
    %v636 = vpop.permute.xlu0 %635
    %638 = vset.pattern.permute.xlu0 12
    %639 = vperm.xlu0 %638, %v39
    %v640 = vpop.permute.xlu0 %639
    %v642 = vmul.f32 %v612, %v572
    %v643 = vmul.f32 %v616, %v577
    %v644 = vmul.f32 %v620, %v582
    %v645 = vmul.f32 %v624, %v587
    %v646 = vmul.f32 %v628, %v592
    %v647 = vmul.f32 %v632, %v597
    %v648 = vmul.f32 %v636, %v602
    %v649 = vmul.f32 %v640, %v607
    %v650 = vadd.f32 %v497, %v642
    %v651 = vadd.f32 %v498, %v643
    %v652 = vadd.f32 %v499, %v644
    %v653 = vadd.f32 %v500, %v645
    %v654 = vadd.f32 %v501, %v646
    %v655 = vadd.f32 %v502, %v647
    %v656 = vadd.f32 %v503, %v648
    %v657 = vadd.f32 %v504, %v649
    %v658 = vadd.f32 %v650, 3.0
    %v659 = vadd.f32 %v651, 3.0
    %v660 = vadd.f32 %v652, 3.0
    %v661 = vadd.f32 %v653, 3.0
    %v662 = vadd.f32 %v654, 3.0
    %v663 = vadd.f32 %v655, 3.0
    %v664 = vadd.f32 %v656, 3.0
    %v665 = vadd.f32 %v657, 3.0
    %v666 = vmax.f32 %v658, 0.0
    %v667 = vmax.f32 %v659, 0.0
    %v668 = vmax.f32 %v660, 0.0
    %v669 = vmax.f32 %v661, 0.0
    %v670 = vmax.f32 %v662, 0.0
    %v671 = vmax.f32 %v663, 0.0
    %v672 = vmax.f32 %v664, 0.0
    %v673 = vmax.f32 %v665, 0.0
    %v674 = vmin.f32 %v666, 6.0
    %v675 = vmin.f32 %v667, 6.0
    %v676 = vmin.f32 %v668, 6.0
    %v677 = vmin.f32 %v669, 6.0
    %v678 = vmin.f32 %v670, 6.0
    %v679 = vmin.f32 %v671, 6.0
    %v680 = vmin.f32 %v672, 6.0
    %v681 = vmin.f32 %v673, 6.0
    %v682 = vmul.f32 %v650, %v674
    %v683 = vmul.f32 %v651, %v675
    %v684 = vmul.f32 %v652, %v676
    %v685 = vmul.f32 %v653, %v677
    %v686 = vmul.f32 %v654, %v678
    %v687 = vmul.f32 %v655, %v679
    %v688 = vmul.f32 %v656, %v680
    %v689 = vmul.f32 %v657, %v681
    %v690 = vsel %vm327, %v682, 0.0
    %691 = vadd.xlane.f32.xlu0 %v690
    %v692 = vpop.xlane.xlu0 %691
    %v693 = vsel %vm327, %v683, 0.0
    %694 = vadd.xlane.f32.xlu0 %v693
    %v695 = vpop.xlane.xlu0 %694
    %v696 = vsel %vm327, %v684, 0.0
    %697 = vadd.xlane.f32.xlu0 %v696
    %v698 = vpop.xlane.xlu0 %697
    %v699 = vsel %vm327, %v685, 0.0
    %700 = vadd.xlane.f32.xlu0 %v699
    %v701 = vpop.xlane.xlu0 %700
    %v702 = vsel %vm327, %v686, 0.0
    %703 = vadd.xlane.f32.xlu0 %v702
    %v704 = vpop.xlane.xlu0 %703
    %v705 = vsel %vm327, %v687, 0.0
    %706 = vadd.xlane.f32.xlu0 %v705
    %v707 = vpop.xlane.xlu0 %706
    %v708 = vsel %vm327, %v688, 0.0
    %709 = vadd.xlane.f32.xlu0 %v708
    %v710 = vpop.xlane.xlu0 %709
    %v711 = vsel %vm327, %v689, 0.0
    %712 = vadd.xlane.f32.xlu0 %v711
    %v713 = vpop.xlane.xlu0 %712
    %v714 = vmul.f32 %v32, %v692
    %v715 = vmul.f32 %v33, %v695
    %v716 = vmul.f32 %v34, %v698
    %v717 = vmul.f32 %v35, %v701
    %v718 = vmul.f32 %v36, %v704
    %v719 = vmul.f32 %v37, %v707
    %v720 = vmul.f32 %v38, %v710
    %v721 = vmul.f32 %v39, %v713
    %vm722 = vcmask 64512
    %v723 = vsel %vm722, %v714, 0.0
    %v724 = vsel %vm722, %v715, 0.0
    %v725 = vadd.f32 %v723, %v724
    %v726 = vsel %vm722, %v716, 0.0
    %v727 = vadd.f32 %v725, %v726
    %v728 = vsel %vm722, %v717, 0.0
    %v729 = vadd.f32 %v727, %v728
    %v730 = vrot.slane %v729, 4
    %v731 = vadd.f32 %v729, %v730
    %v732 = vrot.slane %v731, 2
    %v733 = vadd.f32 %v731, %v732
    %v734 = vrot.slane %v733, 1
    %v735 = vadd.f32 %v733, %v734
    %v736 = vadd.f32 %v735, %v44
    %v737 = vmax.f32 %v736, 0.0
    %v738 = vlaneseq
    %v739 = vshrl.u32 %v738, 7
    %v740 = vsub.s32 0, %v739
    %v741 = vrot.slane %v737, %v740
    %v742 = vmul.f32 %v40, %v741
    %v743 = vmul.f32 %v41, %v741
    %v744 = vmul.f32 %v42, %v741
    %v745 = vmul.f32 %v43, %v741
    %v746 = vsel %vm722, %v742, 0.0
    %747 = vadd.xlane.f32.xlu0 %v746
    %v748 = vpop.xlane.xlu0 %747
    %v749 = vsel %vm722, %v743, 0.0
    %750 = vadd.xlane.f32.xlu0 %v749
    %v751 = vpop.xlane.xlu0 %750
    %v752 = vsel %vm722, %v744, 0.0
    %753 = vadd.xlane.f32.xlu0 %v752
    %v754 = vpop.xlane.xlu0 %753
    %v755 = vsel %vm722, %v745, 0.0
    %756 = vadd.xlane.f32.xlu0 %v755
    %v757 = vpop.xlane.xlu0 %756
    %v758 = vadd.f32 %v748, %v40
    %v759 = vadd.f32 %v751, %v41
    %v760 = vadd.f32 %v754, %v42
    %v761 = vadd.f32 %v757, %v43
    %v762 = vadd.f32 %v758, 3.0
    %v763 = vadd.f32 %v759, 3.0
    %v764 = vadd.f32 %v760, 3.0
    %v765 = vadd.f32 %v761, 3.0
    %v766 = vmax.f32 %v762, 0.0
    %v767 = vmax.f32 %v763, 0.0
    %v768 = vmax.f32 %v764, 0.0
    %v769 = vmax.f32 %v765, 0.0
    %v770 = vmin.f32 %v766, 6.0
    %v771 = vmin.f32 %v767, 6.0
    %v772 = vmin.f32 %v768, 6.0
    %v773 = vmin.f32 %v769, 6.0
    %v774 = vsel %vm722, %v718, 0.0
    %v775 = vsel %vm722, %v719, 0.0
    %v776 = vadd.f32 %v774, %v775
    %v777 = vsel %vm722, %v720, 0.0
    %v778 = vadd.f32 %v776, %v777
    %v779 = vsel %vm722, %v721, 0.0
    %v780 = vadd.f32 %v778, %v779
    %v781 = vrot.slane %v780, 4
    %v782 = vadd.f32 %v780, %v781
    %v783 = vrot.slane %v782, 2
    %v784 = vadd.f32 %v782, %v783
    %v785 = vrot.slane %v784, 1
    %v786 = vadd.f32 %v784, %v785
    %v787 = vadd.f32 %v786, %v44
    %v788 = vmax.f32 %v787, 0.0
    %v789 = vlaneseq
    %v790 = vshrl.u32 %v789, 7
    %v791 = vsub.s32 0, %v790
    %v792 = vrot.slane %v788, %v791
    %v793 = vmul.f32 %v40, %v792
    %v794 = vmul.f32 %v41, %v792
    %v795 = vmul.f32 %v42, %v792
    %v796 = vmul.f32 %v43, %v792
    %v797 = vsel %vm722, %v793, 0.0
    %798 = vadd.xlane.f32.xlu0 %v797
    %v799 = vpop.xlane.xlu0 %798
    %v800 = vsel %vm722, %v794, 0.0
    %801 = vadd.xlane.f32.xlu0 %v800
    %v802 = vpop.xlane.xlu0 %801
    %v803 = vsel %vm722, %v795, 0.0
    %804 = vadd.xlane.f32.xlu0 %v803
    %v805 = vpop.xlane.xlu0 %804
    %v806 = vsel %vm722, %v796, 0.0
    %807 = vadd.xlane.f32.xlu0 %v806
    %v808 = vpop.xlane.xlu0 %807
    %v809 = vadd.f32 %v799, %v40
    %v810 = vadd.f32 %v802, %v41
    %v811 = vadd.f32 %v805, %v42
    %v812 = vadd.f32 %v808, %v43
    %v813 = vadd.f32 %v809, 3.0
    %v814 = vadd.f32 %v810, 3.0
    %v815 = vadd.f32 %v811, 3.0
    %v816 = vadd.f32 %v812, 3.0
    %v817 = vmax.f32 %v813, 0.0
    %v818 = vmax.f32 %v814, 0.0
    %v819 = vmax.f32 %v815, 0.0
    %v820 = vmax.f32 %v816, 0.0
    %v821 = vmin.f32 %v817, 6.0
    %v822 = vmin.f32 %v818, 6.0
    %v823 = vmin.f32 %v819, 6.0
    %v824 = vmin.f32 %v820, 6.0
    %826 = vset.pattern.permute.xlu0 8
    %827 = vperm.xlu0 %826, %v770
    %v828 = vpop.permute.xlu0 %827
    %831 = vset.pattern.permute.xlu0 8
    %832 = vperm.xlu0 %831, %v771
    %v833 = vpop.permute.xlu0 %832
    %836 = vset.pattern.permute.xlu0 8
    %837 = vperm.xlu0 %836, %v772
    %v838 = vpop.permute.xlu0 %837
    %841 = vset.pattern.permute.xlu0 8
    %842 = vperm.xlu0 %841, %v773
    %v843 = vpop.permute.xlu0 %842
    %846 = vset.pattern.permute.xlu0 8
    %847 = vperm.xlu0 %846, %v821
    %v848 = vpop.permute.xlu0 %847
    %851 = vset.pattern.permute.xlu0 8
    %852 = vperm.xlu0 %851, %v822
    %v853 = vpop.permute.xlu0 %852
    %856 = vset.pattern.permute.xlu0 8
    %857 = vperm.xlu0 %856, %v823
    %v858 = vpop.permute.xlu0 %857
    %861 = vset.pattern.permute.xlu0 8
    %862 = vperm.xlu0 %861, %v824
    %v863 = vpop.permute.xlu0 %862
    %v865 = vmul.f32 %v682, %v828
    %v866 = vmul.f32 %v683, %v833
    %v867 = vmul.f32 %v684, %v838
    %v868 = vmul.f32 %v685, %v843
    %v869 = vmul.f32 %v686, %v848
    %v870 = vmul.f32 %v687, %v853
    %v871 = vmul.f32 %v688, %v858
    %v872 = vmul.f32 %v689, %v863
    %874 = vset.pattern.permute.xlu0 9
    %875 = vperm.xlu0 %874, %v40
    %v876 = vpop.permute.xlu0 %875
    %879 = vset.pattern.permute.xlu0 9
    %880 = vperm.xlu0 %879, %v41
    %v881 = vpop.permute.xlu0 %880
    %884 = vset.pattern.permute.xlu0 9
    %885 = vperm.xlu0 %884, %v42
    %v886 = vpop.permute.xlu0 %885
    %889 = vset.pattern.permute.xlu0 9
    %890 = vperm.xlu0 %889, %v43
    %v891 = vpop.permute.xlu0 %890
    %vm893 = vcmask 523264
    %v895 = vsel %vm893, %v24, 0
    %v898 = vsel %vm893, %v25, 0
    %v901 = vsel %vm893, %v26, 0
    %v904 = vsel %vm893, %v27, 0
    %906 = vmatprep.subr.mxu0 0.0
    %907 = vmatpush1.msra.mxu0 0.0
    %908 = vmatprep.subr.mxu0 0.0
    %909 = vmatpush1.msra.mxu0 0.0
    %910 = vmatprep.subr.mxu0 0.0
    %911 = vmatpush1.msra.mxu0 0.0
    %912 = vmatprep.subr.mxu0 0.0
    %913 = vmatpush1.msra.mxu0 0.0
    %914 = vmatprep.subr.mxu0 0.0
    %915 = vmatpush1.msra.mxu0 0.0
    %916 = vmatprep.subr.mxu0 0.0
    %917 = vmatpush1.msra.mxu0 0.0
    %918 = vmatprep.subr.mxu0 0.0
    %919 = vmatpush1.msra.mxu0 0.0
    %920 = vmatprep.subr.mxu0 0.0
    %921 = vmatpush1.msra.mxu0 0.0
    %922 = vmatprep.subr.mxu0 0.0
    %923 = vmatpush1.msra.mxu0 %v872
    %924 = vmatprep.subr.mxu0 0.0
    %925 = vmatpush1.msra.mxu0 %v871
    %926 = vmatprep.subr.mxu0 0.0
    %927 = vmatpush1.msra.mxu0 %v870
    %928 = vmatprep.subr.mxu0 0.0
    %929 = vmatpush1.msra.mxu0 %v869
    %930 = vmatprep.subr.mxu0 0.0
    %931 = vmatpush1.msra.mxu0 %v868
    %932 = vmatprep.subr.mxu0 0.0
    %933 = vmatpush1.msra.mxu0 %v867
    %934 = vmatprep.subr.mxu0 0.0
    %935 = vmatpush1.msra.mxu0 %v866
    %936 = vmatprep.subr.mxu0 0.0
    %937 = vmatpush1.msra.mxu0 %v865
    %938 = vmatprep.subr.mxu0 0.0
    %939 = vmatpush2.msra.mxu0 0.0
    %940 = vmatprep.subr.mxu0 0.0
    %941 = vmatpush2.msra.mxu0 0.0
    %942 = vmatprep.subr.mxu0 0.0
    %943 = vmatpush2.msra.mxu0 0.0
    %944 = vmatprep.subr.mxu0 0.0
    %945 = vmatpush2.msra.mxu0 0.0
    %946 = vmatprep.subr.mxu0 0.0
    %947 = vmatpush2.msra.mxu0 0.0
    %948 = vmatprep.subr.mxu0 0.0
    %949 = vmatpush2.msra.mxu0 0.0
    %950 = vmatprep.subr.mxu0 0.0
    %951 = vmatpush2.msra.mxu0 0.0
    %952 = vmatprep.subr.mxu0 0.0
    %953 = vmatpush2.msra.mxu0 0.0
    %954 = vmatprep.subr.mxu0 0.0
    %955 = vmatpush2.msra.mxu0 0.0
    %956 = vmatprep.subr.mxu0 0.0
    %957 = vmatpush2.msra.mxu0 0.0
    %958 = vmatprep.subr.mxu0 0.0
    %959 = vmatpush2.msra.mxu0 0.0
    %960 = vmatprep.subr.mxu0 0.0
    %961 = vmatpush2.msra.mxu0 0.0
    %962 = vmatprep.subr.mxu0 0.0
    %963 = vmatpush2.msra.mxu0 0.0
    %964 = vmatprep.subr.mxu0 0.0
    %965 = vmatpush2.msra.mxu0 0.0
    %966 = vmatprep.subr.mxu0 0.0
    %967 = vmatpush2.msra.mxu0 0.0
    %968 = vmatprep.subr.mxu0 0.0
    %969 = vmatpush2.msra.mxu0 0.0
    %970 = vmatprep.mubr.f32.mxu0 0.0
    %971 = vmatmul.mubr.f32.gmra.mxu0 %v895
    %v972 = vpop.f32.mrf.mxu0
    %v973 = vadd.f32 %v876, %v972
    %v974 = vpop.f32.mrf.mxu0
    %975 = vmatprep.mubr.f32.mxu0 0.0
    %976 = vmatmul.mubr.f32.gmra.mxu0 %v898
    %v977 = vpop.f32.mrf.mxu0
    %v978 = vadd.f32 %v881, %v977
    %v979 = vpop.f32.mrf.mxu0
    %980 = vmatprep.mubr.f32.mxu0 0.0
    %981 = vmatmul.mubr.f32.gmra.mxu0 %v901
    %v982 = vpop.f32.mrf.mxu0
    %v983 = vadd.f32 %v886, %v982
    %v984 = vpop.f32.mrf.mxu0
    %985 = vmatprep.mubr.f32.mxu0 0.0
    %986 = vmatmul.mubr.f32.gmra.mxu0 %v904
    %v987 = vpop.f32.mrf.mxu0
    %v988 = vadd.f32 %v891, %v987
    %v989 = vpop.f32.mrf.mxu0
    %990 = vdwg.mxu0
    %v991 = vadd.f32 %v973, %v12
    %v992 = vadd.f32 %v978, %v13
    %v993 = vadd.f32 %v983, %v14
    %v994 = vadd.f32 %v988, %v15
    %995 = vst.msk [vmem:[#allocation2] sm:$0xff] %vm327, %v991
    %996 = vst.msk [vmem:[#allocation2 + $0x8] sm:$0xff] %vm327, %v992
    %997 = vst.msk [vmem:[#allocation2 + $0x10] sm:$0xff] %vm327, %v993
    %998 = vst.msk [vmem:[#allocation2 + $0x18] sm:$0xff] %vm327, %v994
    // Predicated region
    $region10: #{inverted_residual_pallas.1} parent=1 // pred_check
      _
    $region11: #{inverted_residual_pallas.1} parent=1 // pred_check_branch
      %1000 = sbr.rel (0) target = $region13
    $region12: #{inverted_residual_pallas.1} parent=1 // pred_region
      %s1002 = ssub.s32 512, 512
      %1003 = vsyncadd [#allocation3], %s1002
      %s1004 = sshll.u32 [#allocation2], 4
      %s1005 = int_to_ptr.vmem [resolvable:$true] %s1004
      %1010 = dma.vmem_to_hbm [thread:$0]  %s1005, 512, %s2, [#allocation3], 128, 128, 8
    $region13: #{inverted_residual_pallas.1} parent=1 // pred_fallthru
      _
    // Predicated region
    $region14: #{inverted_residual_pallas.1} parent=1 // pred_check
      _
    $region15: #{inverted_residual_pallas.1} parent=1 // pred_check_branch
      %1012 = sbr.rel (0) target = $region17
    $region16: #{inverted_residual_pallas.1} parent=1 // pred_region
      %1013 = dma.done [#allocation3], 512
    $region17: #{inverted_residual_pallas.1} parent=1 // pred_fallthru
      _
    %1014 = vsyncpa [#allocation3], 1

</llo_original>
